<compile_context>
chip_gen: v7x
topology: tpu7x:2x2x1
jax: 0.10.0
libtpu: 0.0.40
codegen_flags: <defaults>
</compile_context>

<pallas_src>
import functools

import jax
import jax.numpy as jnp
from jax.experimental import pallas as pl
from jax.experimental.pallas import tpu as pltpu

_EPS = 1e-5


# ---------------------------------------------------------------------------
# Kernels
# ---------------------------------------------------------------------------

def _cbn_stats_affine_kernel(x_ref, gb_ref, o_ref, *, l_valid):
    """Single-HBM-pass path: one (B, F_tile, Lp) slab per grid step.

    x_ref  : (B, F_tile, Lp)  input dtype, Lp a multiple of 128 (zero-padded)
    gb_ref : (B, F_tile, 2)   f32, stacked [gamma, beta]
    o_ref  : (B, F_tile, Lp)  output in input dtype
    """
    b = x_ref.shape[0]
    lp = x_ref.shape[2]

    xf = x_ref[...].astype(jnp.float32)
    inv_n = 1.0 / (b * l_valid)

    # Pass 1: per-channel mean over (B, L).  Padded lanes are zero -> no effect.
    s1 = jnp.sum(xf, axis=2, keepdims=True)            # (B, Ft, 1)  lane reduce (XLU)
    s1 = jnp.sum(s1, axis=0, keepdims=True)            # (1, Ft, 1)
    mean = s1 * inv_n

    # Pass 2 (VMEM-resident, hidden under the HBM stream): centered variance.
    d = xf - mean                                       # (B, Ft, Lp) f32 working copy
    s2 = jnp.sum(d * d, axis=2, keepdims=True)
    s2 = jnp.sum(s2, axis=0, keepdims=True)             # (1, Ft, 1)
    n_pad = lp - l_valid
    if n_pad:
        # Each zero-padded lane contributed (0 - mean)^2; subtract exactly.
        s2 = s2 - (b * n_pad) * (mean * mean)
    var = s2 * inv_n                                     # biased variance (BN training)
    inv_std = jax.lax.rsqrt(var + _EPS)

    gb = gb_ref[...].astype(jnp.float32)                 # (B, Ft, 2)
    scale = gb[:, :, 0:1] * inv_std                      # gamma * rsqrt(var + eps)
    beta = gb[:, :, 1:2]

    # out = gamma * (x - mean) * inv_std + beta == d * scale + beta  (one FMA)
    o_ref[...] = (d * scale + beta).astype(o_ref.dtype)


def _affine_kernel(x_ref, ss_ref, o_ref):
    """Fallback normalize+affine: out = x * scale + shift (stats precomputed)."""
    ss = ss_ref[...].astype(jnp.float32)                 # (B, Ft, 2) = [scale, shift]
    o_ref[...] = (x_ref[...].astype(jnp.float32) * ss[:, :, 0:1]
                  + ss[:, :, 1:2]).astype(o_ref.dtype)


# ---------------------------------------------------------------------------
# Tile / VMEM sizing
# ---------------------------------------------------------------------------

def _vmem_budgets(max_block_bytes=None):
    """Generation-aware (vmem_limit_bytes, block_budget_bytes)."""
    cap = None
    try:
        info = pltpu.get_tpu_info()
        cap = getattr(info, "vmem_capacity_bytes", None)
    except Exception:
        cap = None
    if not cap:
        cap = 64 * 1024 * 1024          # conservative default: v7x-sized VMEM
    vmem_limit = min(int(cap) * 3 // 4, 96 * 1024 * 1024)   # 128MiB->96, 64MiB->48
    budget = vmem_limit // 2                                  # 48 MiB / 24 MiB
    if max_block_bytes is not None:
        budget = min(budget, int(max_block_bytes))
    return vmem_limit, budget


def _choose_f_tile(F, per_f_bytes, budget_bytes, min_steps=2):
    """Largest multiple-of-8 divisor of F fitting the budget, preferring >= min_steps
    grid steps so the 'parallel' axis can be sharded across TensorCores (v7x)."""
    if F % 8 != 0:
        return F                         # full-F block is always a legal block shape
    cands = [t for t in range(8, F + 1, 8)
             if F % t == 0 and t * per_f_bytes <= budget_bytes]
    if not cands:
        return 8
    multi = [t for t in cands if F // t >= min_steps]
    return max(multi) if multi else max(cands)


# ---------------------------------------------------------------------------
# Wrapper
# ---------------------------------------------------------------------------

def cbatchnorm1d_legacy(x, c, w_gamma, b_gamma, w_beta, b_beta, *,
                        max_block_bytes=None):
    """x: (B, F, L), c: (B, C), w_*: (C, F) (pre-transposed), b_*: (1, F)."""
    B, F, L = x.shape

    # Tiny conditional-affine matmuls stay in XLA (far below MXU tile size).
    gamma = (c @ w_gamma + b_gamma).astype(jnp.float32)          # (B, F)
    beta = (c @ w_beta + b_beta).astype(jnp.float32)             # (B, F)
    gb = jnp.stack([gamma, beta], axis=-1)                       # (B, F, 2)

    vmem_limit, budget = _vmem_budgets(max_block_bytes)

    # Lane-dense last dim: pad L to a multiple of 128, slice the output back.
    Lp = ((L + 127) // 128) * 128
    xp = x if Lp == L else jnp.pad(x, ((0, 0), (0, 0), (0, Lp - L)))

    itemsize = x.dtype.itemsize
    # Per-channel VMEM cost of one (B, f_tile, Lp) grid step:
    #   in + out blocks, double-buffered:            2 * 2 * B * Lp * itemsize
    #   stacked (gamma,beta) block, lane-padded->128: 2 * B * 128 * 4
    #   in-kernel f32 working copy (xf / d):          2 * B * Lp * 4
    per_f = 4 * B * Lp * itemsize + 2 * B * 128 * 4 + 2 * B * Lp * 4

    min_f = 8 if F % 8 == 0 else F
    single_pass_ok = min_f * per_f <= budget

    if single_pass_ok:
        f_tile = _choose_f_tile(F, per_f, budget)
        out = pl.pallas_call(
            functools.partial(_cbn_stats_affine_kernel, l_valid=L),
            out_shape=jax.ShapeDtypeStruct((B, F, Lp), x.dtype),
            grid_spec=pltpu.PrefetchScalarGridSpec(
                num_scalar_prefetch=0,
                grid=(F // f_tile,),
                in_specs=[
                    pl.BlockSpec((B, f_tile, Lp), lambda f: (0, f, 0)),
                    pl.BlockSpec((B, f_tile, 2), lambda f: (0, f, 0)),
                ],
                out_specs=pl.BlockSpec((B, f_tile, Lp), lambda f: (0, f, 0)),
            ),
            compiler_params=pltpu.CompilerParams(
                dimension_semantics=("parallel",),    # channels are independent
                vmem_limit_bytes=vmem_limit,
            ),
        )(xp, gb)
    else:
        # Fallback for huge B*L: stats via XLA (one extra HBM pass over x),
        # then an (F, L)-tiled Pallas FMA kernel.
        mean = jnp.mean(x.astype(jnp.float32), axis=(0, 2), keepdims=True)
        var = jnp.mean(jnp.square(x.astype(jnp.float32) - mean),
                       axis=(0, 2), keepdims=True)
        inv_std = jax.lax.rsqrt(var + _EPS)
        scale = gamma[:, :, None] * inv_std                       # (B, F, 1)
        shift = beta[:, :, None] - mean * scale                   # (B, F, 1)
        ss = jnp.concatenate([scale, shift], axis=-1)              # (B, F, 2)

        f_tile = 8 if F % 8 == 0 else F
        fixed = 2 * B * ((f_tile + 7) // 8 * 8) * 128 * 4          # padded ss block x2 bufs
        per_l = 4 * B * f_tile * itemsize + 2 * B * f_tile * 4
        l_cands = [l for l in range(128, Lp + 1, 128) if Lp % l == 0]
        l_fit = [l for l in l_cands if fixed + l * per_l <= budget]
        l_tile = max(l_fit) if l_fit else 128

        out = pl.pallas_call(
            _affine_kernel,
            out_shape=jax.ShapeDtypeStruct((B, F, Lp), x.dtype),
            grid_spec=pltpu.PrefetchScalarGridSpec(
                num_scalar_prefetch=0,
                grid=(F // f_tile, Lp // l_tile),
                in_specs=[
                    pl.BlockSpec((B, f_tile, l_tile), lambda f, l: (0, f, l)),
                    pl.BlockSpec((B, f_tile, 2), lambda f, l: (0, f, 0)),
                ],
                out_specs=pl.BlockSpec((B, f_tile, l_tile), lambda f, l: (0, f, l)),
            ),
            compiler_params=pltpu.CompilerParams(
                dimension_semantics=("parallel", "parallel"),
                vmem_limit_bytes=vmem_limit,
            ),
        )(xp, ss)

    return out if Lp == L else out[:, :, :L]


# ---------------------------------------------------------------------------
# Reference + demo
# ---------------------------------------------------------------------------

def _reference(x, c, w_gamma, b_gamma, w_beta, b_beta):
    gamma = (c @ w_gamma + b_gamma)[:, :, None]
    beta = (c @ w_beta + b_beta)[:, :, None]
    mean = jnp.mean(x, axis=(0, 2), keepdims=True)
    var = jnp.mean((x - mean) ** 2, axis=(0, 2), keepdims=True)
    net = (x - mean) / jnp.sqrt(var + _EPS)
    return gamma * net + beta


if __name__ == "__main__":
    B, C_DIM, F_DIM, L = 4, 8, 16, 256

    key = jax.random.PRNGKey(0)
    kx, kc, kwg, kwb, kx2 = jax.random.split(key, 5)

    x = jax.random.normal(kx, (B, F_DIM, L), dtype=jnp.float32)
    c = jax.random.normal(kc, (B, C_DIM), dtype=jnp.float32)

    # nn.Linear(c_dim, f_dim) params, pre-transposed as (C, F); biases follow
    # reset_parameters() (gamma bias ones, beta bias zeros) but weights are
    # made non-zero to exercise the conditional path.
    w_gamma = 0.1 * jax.random.normal(kwg, (C_DIM, F_DIM), dtype=jnp.float32)
    b_gamma = jnp.ones((1, F_DIM), dtype=jnp.float32)
    w_beta = 0.1 * jax.random.normal(kwb, (C_DIM, F_DIM), dtype=jnp.float32)
    b_beta = jnp.zeros((1, F_DIM), dtype=jnp.float32)

    # 1) main single-pass path (grid over F, >= 2 steps -> megacore-friendly)
    out = jax.block_until_ready(
        cbatchnorm1d_legacy(x, c, w_gamma, b_gamma, w_beta, b_beta))
    ref = _reference(x, c, w_gamma, b_gamma, w_beta, b_beta)
    assert out.shape == (B, F_DIM, L)
    assert jnp.allclose(out, ref, atol=2e-4, rtol=2e-4), "main path mismatch"

    # 2) main path with non-multiple-of-128 L (exercises the lane padding +
    #    exact stats correction; output sliced back to L).
    L_ODD = 200
    x_odd = jax.random.normal(kx2, (B, F_DIM, L_ODD), dtype=jnp.float32)
    out_odd = jax.block_until_ready(
        cbatchnorm1d_legacy(x_odd, c, w_gamma, b_gamma, w_beta, b_beta))
    ref_odd = _reference(x_odd, c, w_gamma, b_gamma, w_beta, b_beta)
    assert out_odd.shape == (B, F_DIM, L_ODD)
    assert jnp.allclose(out_odd, ref_odd, atol=2e-4, rtol=2e-4), "padded-L mismatch"

    # 3) force the L-tiled fallback path with a tiny block budget (robustness).
    out_fb = jax.block_until_ready(
        cbatchnorm1d_legacy(x, c, w_gamma, b_gamma, w_beta, b_beta,
                            max_block_bytes=128 * 1024))
    assert jnp.allclose(out_fb, ref, atol=2e-4, rtol=2e-4), "fallback mismatch"

    print("KERNEL_OK")
</pallas_src>

<mosaic_0001>
module attributes {stable_mosaic.version = 11 : i64} {
  func.func @_cbn_stats_affine_kernel(%arg0: i32, %arg1: memref<4x8x256xf32, #tpu.memory_space<vmem>>, %arg2: memref<4x8x2xf32, #tpu.memory_space<vmem>>, %arg3: memref<4x8x256xf32, #tpu.memory_space<vmem>>) attributes {dimension_semantics = [#tpu.dimension_semantics<parallel>], iteration_bounds = array<i64: 2>, scalar_prefetch = 0 : i64, scratch_operands = 0 : i64, tpu.core_type = #tpu.core_type<tc>, window_params = [{transform_indices = @transform_0, window_bounds = array<i64: 4, 8, 256>}, {transform_indices = @transform_1, window_bounds = array<i64: 4, 8, 2>}, {transform_indices = @transform_2, window_bounds = array<i64: 4, 8, 256>}]} {
    %c0 = arith.constant 0 : index
    %c0_0 = arith.constant 0 : index
    %c0_1 = arith.constant 0 : index
    %0 = vector.load %arg1[%c0, %c0_0, %c0_1] : memref<4x8x256xf32, #tpu.memory_space<vmem>>, vector<4x8x256xf32>
    %cst = arith.constant dense<0.000000e+00> : vector<4x8xf32>
    %1 = vector.multi_reduction <add>, %0, %cst [2] : vector<4x8x256xf32> to vector<4x8xf32>
    %2 = vector.shape_cast %1 : vector<4x8xf32> to vector<4x8x1xf32>
    %cst_2 = arith.constant dense<0.000000e+00> : vector<8x1xf32>
    %3 = vector.multi_reduction <add>, %2, %cst_2 [0] : vector<4x8x1xf32> to vector<8x1xf32>
    %4 = vector.shape_cast %3 : vector<8x1xf32> to vector<1x8x1xf32>
    %cst_3 = arith.constant 9.765625E-4 : f32
    %5 = vector.broadcast %cst_3 : f32 to vector<1x8x1xf32>
    %6 = arith.mulf %4, %5 : vector<1x8x1xf32>
    %7 = vector.broadcast %6 : vector<1x8x1xf32> to vector<4x8x256xf32>
    %8 = arith.subf %0, %7 : vector<4x8x256xf32>
    %9 = arith.mulf %8, %8 : vector<4x8x256xf32>
    %cst_4 = arith.constant dense<0.000000e+00> : vector<4x8xf32>
    %10 = vector.multi_reduction <add>, %9, %cst_4 [2] : vector<4x8x256xf32> to vector<4x8xf32>
    %11 = vector.shape_cast %10 : vector<4x8xf32> to vector<4x8x1xf32>
    %cst_5 = arith.constant dense<0.000000e+00> : vector<8x1xf32>
    %12 = vector.multi_reduction <add>, %11, %cst_5 [0] : vector<4x8x1xf32> to vector<8x1xf32>
    %13 = vector.shape_cast %12 : vector<8x1xf32> to vector<1x8x1xf32>
    %cst_6 = arith.constant 9.765625E-4 : f32
    %14 = vector.broadcast %cst_6 : f32 to vector<1x8x1xf32>
    %15 = arith.mulf %13, %14 : vector<1x8x1xf32>
    %cst_7 = arith.constant 9.99999974E-6 : f32
    %16 = vector.broadcast %cst_7 : f32 to vector<1x8x1xf32>
    %17 = arith.addf %15, %16 : vector<1x8x1xf32>
    %18 = math.rsqrt %17 : vector<1x8x1xf32>
    %c0_8 = arith.constant 0 : index
    %c0_9 = arith.constant 0 : index
    %c0_10 = arith.constant 0 : index
    %19 = vector.load %arg2[%c0_8, %c0_9, %c0_10] : memref<4x8x2xf32, #tpu.memory_space<vmem>>, vector<4x8x2xf32>
    %20 = vector.extract_strided_slice %19 {offsets = [0, 0, 0], sizes = [4, 8, 1], strides = [1, 1, 1]} : vector<4x8x2xf32> to vector<4x8x1xf32>
    %21 = vector.broadcast %18 : vector<1x8x1xf32> to vector<4x8x1xf32>
    %22 = arith.mulf %20, %21 : vector<4x8x1xf32>
    %23 = vector.extract_strided_slice %19 {offsets = [0, 0, 1], sizes = [4, 8, 1], strides = [1, 1, 1]} : vector<4x8x2xf32> to vector<4x8x1xf32>
    %24 = vector.broadcast %22 : vector<4x8x1xf32> to vector<4x8x256xf32>
    %25 = arith.mulf %8, %24 : vector<4x8x256xf32>
    %26 = vector.broadcast %23 : vector<4x8x1xf32> to vector<4x8x256xf32>
    %27 = arith.addf %25, %26 : vector<4x8x256xf32>
    %c0_11 = arith.constant 0 : index
    %c0_12 = arith.constant 0 : index
    %c0_13 = arith.constant 0 : index
    %28 = vector.load %arg3[%c0_11, %c0_12, %c0_13] : memref<4x8x256xf32, #tpu.memory_space<vmem>>, vector<4x8x256xf32>
    tpu.vector_store %arg3[%c0_11, %c0_12, %c0_13], %27 {strides = array<i32>} : memref<4x8x256xf32, #tpu.memory_space<vmem>>, vector<4x8x256xf32>,
    return
  }
  func.func @transform_0(%arg0: i32) -> (i32, i32, i32) {
    %c0_i32 = arith.constant 0 : i32
    %c0_i32_0 = arith.constant 0 : i32
    %c0_i32_1 = arith.constant 0 : i32
    return %c0_i32, %arg0, %c0_i32_0 : i32, i32, i32
  }
  func.func @transform_1(%arg0: i32) -> (i32, i32, i32) {
    %c0_i32 = arith.constant 0 : i32
    %c0_i32_0 = arith.constant 0 : i32
    %c0_i32_1 = arith.constant 0 : i32
    return %c0_i32, %arg0, %c0_i32_0 : i32, i32, i32
  }
  func.func @transform_2(%arg0: i32) -> (i32, i32, i32) {
    %c0_i32 = arith.constant 0 : i32
    %c0_i32_0 = arith.constant 0 : i32
    %c0_i32_1 = arith.constant 0 : i32
    return %c0_i32, %arg0, %c0_i32_0 : i32, i32, i32
  }
}

</mosaic_0001>

<llo_original>
// kernel: tpu_custom_call.1
$region0: #{tpu_custom_call.1}
  #allocation0 [shape = 'u32[]', space=smem, size = 0x4, offset = 0x4, fixed_abs, tag = 'smem constant byte address 0x4 - core index']
  #allocation1 [shape = 'u32[144,128]{1,0:T(1,128)}', space=vmem, size = 0x12000, scoped, tag = 'internal scratch']
  %s0 = inlined_call_operand.hbm [shape: f32[4,16,256], index: 0, kind: input, shape index: {}]
  %s1 = inlined_call_operand.vmem [shape: f32[4,16,2], index: 1, kind: input, shape index: {}]
  %s2 = inlined_call_operand.hbm [shape: f32[4,16,256], index: 2, kind: output, shape index: {}]
  %s3 = sld [smem:[#allocation0]]
  $region83: #{tpu_custom_call.1} parent=0
    _
  %s5 = ssub.s32 1, %s3
  %s6 = scalar_select 0, %s5, %s3
  $region1: #{tpu_custom_call.1} parent=0
    #allocation2 [shape = 'u8[65536]{0}', space=vmem, size = 0x10000, scoped, tag = 'input window, operand 0']
    #allocation3 [shape = 's32[2]{0}', space=sflag, size = 0x8, scoped, tag = 'scoped memory for tpu_custom_call.1']
    #allocation4 [shape = 's32[2]{0}', space=sflag, size = 0x8, scoped, tag = 'scoped memory for tpu_custom_call.1']
    #allocation5 [shape = 'u8[32768]{0}', space=vmem, size = 0x8000, scoped, tag = 'input window, operand 1']
    #allocation6 [shape = 'u8[65536]{0}', space=vmem, size = 0x10000, scoped, tag = 'output window, operand 0']
    %7 = vsyncpa [#allocation3], 0
    %s8 = scalar_lea.sflag [#allocation3], 1
    %9 = vsyncpa %s8, 0
    %10 = vsyncpa [#allocation4], 0
    %s11 = scalar_lea.sflag [#allocation4], 1
    %12 = vsyncpa %s11, 0
    loop: start=0, step=1, limit=4
    $region2: #{tpu_custom_call.1} parent=1 // loop_pre_header
      _
    $region3: #{tpu_custom_call.1} parent=1 // loop_header
      %s14 = sphi 0, %s18
      %p15 = scmp.ge.s32.totalorder %s14, 4
      %s24 = sphi 0, %s26
      %s27 = sphi 0, %s24
      %s28 = sphi 0, %s27
      %s44 = sphi 0, %s28
      %s50 = sphi 0, %s52
      %s53 = sphi 0, %s50
      %s54 = sphi 0, %s53
      %s70 = sphi 0, %s54
      %s76 = sphi 0, %s78
      %s79 = sphi 0, %s76
      %s80 = sphi 0, %s79
      %s96 = sphi 0, %s80
    $region4: #{tpu_custom_call.1} parent=1 // loop_header_branch
      %17 = sbr.rel (%p15) target = $region8
    $region5: #{tpu_custom_call.1} parent=1 // loop_body
      %s19 = ssub.s32 %s14, 1
      %s20 = ssub.s32 %s14, 2
      %s21 = sadd.s32 %s14, 1
      %s22 = ssub.s32 %s14, %s21
      %p23 = scmp.eq.s32.totalorder %s22, 0
      %s25 = sadd.s32 %s24, 1
      %s26 = scalar_select %p23, %s24, %s25
      %p29 = pneg %p23
      %p30 = scmp.eq.s32.totalorder %s14, 1
      %p31 = por %p29, %p30
      %p32 = scmp.ne.s32.totalorder %s24, %s27
      %p33 = scmp.eq.s32.totalorder %s14, 0
      %p34 = por %p32, %p33
      %p35 = scmp.ne.s32.totalorder %s24, %s27
      %p36 = scmp.eq.s32.totalorder %s19, 1
      %p37 = por %p35, %p36
      %p38 = scmp.ne.s32.totalorder %s27, %s28
      %p39 = scmp.eq.s32.totalorder %s19, 0
      %p40 = por %p38, %p39
      %p41 = scmp.ne.s32.totalorder %s27, %s28
      %p42 = scmp.eq.s32.totalorder %s20, 1
      %p43 = por %p41, %p42
      %p45 = scmp.ne.s32.totalorder %s28, %s44
      %p46 = scmp.eq.s32.totalorder %s20, 0
      %p47 = por %p45, %p46
      %s48 = ssub.s32 %s14, %s21
      %p49 = scmp.eq.s32.totalorder %s48, 0
      %s51 = sadd.s32 %s50, 1
      %s52 = scalar_select %p49, %s50, %s51
      %p55 = pneg %p49
      %p56 = scmp.eq.s32.totalorder %s14, 1
      %p57 = por %p55, %p56
      %p58 = scmp.ne.s32.totalorder %s50, %s53
      %p59 = scmp.eq.s32.totalorder %s14, 0
      %p60 = por %p58, %p59
      %p61 = scmp.ne.s32.totalorder %s50, %s53
      %p62 = scmp.eq.s32.totalorder %s19, 1
      %p63 = por %p61, %p62
      %p64 = scmp.ne.s32.totalorder %s53, %s54
      %p65 = scmp.eq.s32.totalorder %s19, 0
      %p66 = por %p64, %p65
      %p67 = scmp.ne.s32.totalorder %s53, %s54
      %p68 = scmp.eq.s32.totalorder %s20, 1
      %p69 = por %p67, %p68
      %p71 = scmp.ne.s32.totalorder %s54, %s70
      %p72 = scmp.eq.s32.totalorder %s20, 0
      %p73 = por %p71, %p72
      %s74 = ssub.s32 %s14, %s21
      %p75 = scmp.eq.s32.totalorder %s74, 0
      %s77 = sadd.s32 %s76, 1
      %s78 = scalar_select %p75, %s76, %s77
      %p81 = pneg %p75
      %p82 = scmp.eq.s32.totalorder %s14, 1
      %p83 = por %p81, %p82
      %p84 = scmp.ne.s32.totalorder %s76, %s79
      %p85 = scmp.eq.s32.totalorder %s14, 0
      %p86 = por %p84, %p85
      %p87 = scmp.ne.s32.totalorder %s76, %s79
      %p88 = scmp.eq.s32.totalorder %s19, 1
      %p89 = por %p87, %p88
      %p90 = scmp.ne.s32.totalorder %s79, %s80
      %p91 = scmp.eq.s32.totalorder %s19, 0
      %p92 = por %p90, %p91
      %p93 = scmp.ne.s32.totalorder %s79, %s80
      %p94 = scmp.eq.s32.totalorder %s20, 1
      %p95 = por %p93, %p94
      %p97 = scmp.ne.s32.totalorder %s80, %s96
      %p98 = scmp.eq.s32.totalorder %s20, 0
      %p99 = por %p97, %p98
      %p100 = scmp.le.s32.totalorder 1, %s14
      %p101 = scmp.lt.s32.totalorder %s14, 3
      %p102 = pnand %p100, %p101
      %p103 = pneg %p102
      // Predicated region
      $region9: #{tpu_custom_call.1} parent=5 // pred_check
        _
      $region10: #{tpu_custom_call.1} parent=5 // pred_check_branch
        %105 = sbr.rel (%p102) target = $region12
      $region11: #{tpu_custom_call.1} parent=5 // pred_region
        %s106 = ssub.s32 %s14, 1
      $region12: #{tpu_custom_call.1} parent=5 // pred_fallthru
        _
      %p107 = scmp.lt.s32.totalorder %s14, 2
      // Predicated region
      $region13: #{tpu_custom_call.1} parent=5 // pred_check
        %p108 = pneg %p107
      $region14: #{tpu_custom_call.1} parent=5 // pred_check_branch
        %110 = sbr.rel (%p108) target = $region16
      $region15: #{tpu_custom_call.1} parent=5 // pred_region
        // Predicated region
        $region17: #{tpu_custom_call.1} parent=15 // pred_check
          %p111 = pneg %p34
        $region18: #{tpu_custom_call.1} parent=15 // pred_check_branch
          %113 = sbr.rel (%p111) target = $region20
        $region19: #{tpu_custom_call.1} parent=15 // pred_region
          %s114 = sand.u32 %s24, 1
          %s115 = scalar_lea.sflag [#allocation3], %s114
          %s116 = sand.u32 %s24, 1
          %s117 = smul.addr %s116, 64
          %s118 = scalar_lea.vmem [#allocation2], %s117
          %s120 = ssub.s32 1024, 1024
          %121 = vsyncadd %s115, %s120
          %s122 = smul.addr %s14, 2
          %s123 = smul.addr %s122, 128
          %s124 = scalar_lea.hbm %s0, %s123
          %s125 = sshll.u32 %s118, 4
          %s126 = int_to_ptr.vmem [resolvable:$true] %s125
          %131 = dma.hbm_to_vmem [thread:$0]  %s124, 1024, %s126, %s115, 512, 256, 16
        $region20: #{tpu_custom_call.1} parent=15 // pred_fallthru
          _
        // Predicated region
        $region21: #{tpu_custom_call.1} parent=15 // pred_check
          %p132 = pneg %p60
        $region22: #{tpu_custom_call.1} parent=15 // pred_check_branch
          %134 = sbr.rel (%p132) target = $region24
        $region23: #{tpu_custom_call.1} parent=15 // pred_region
          %s135 = sand.u32 %s50, 1
          %s136 = sand.u32 %s50, 1
          %s137 = smul.addr %s136, 32
          %s138 = scalar_lea.vmem [#allocation5], %s137
          %s139 = smul.addr %s14, 8
          %s140 = scalar_lea.vmem %s1, %s139
          // Predicated region
          $region25: #{tpu_custom_call.1} parent=23 // pred_check
            _
          $region26: #{tpu_custom_call.1} parent=23 // pred_check_branch
            %142 = sbr.rel (0) target = $region28
          $region27: #{tpu_custom_call.1} parent=23 // pred_region
            // Predicated region
            $region29: #{tpu_custom_call.1} parent=27 // pred_check
              _
            $region30: #{tpu_custom_call.1} parent=27 // pred_check_branch
              %144 = sbr.rel (0) target = $region32
            $region31: #{tpu_custom_call.1} parent=27 // pred_region
              // Predicated region
              $region44: #{tpu_custom_call.1} parent=31 // pred_check
                _
              $region45: #{tpu_custom_call.1} parent=31 // pred_check_branch
                %165 = sbr.rel (0) target = $region47
              $region46: #{tpu_custom_call.1} parent=31 // pred_region
                loop: start=0, step=1, limit=1
                $region48: #{tpu_custom_call.1} parent=46 // loop_pre_header
                  _
                $region49: #{tpu_custom_call.1} parent=46 // loop_header
                  %s167 = sphi 0, %s171
                  %p168 = scmp.ge.s32.totalorder %s167, 1
                  %s172 = sphi %s140, %s140
                  %s173 = sphi %s138, %s138
                $region50: #{tpu_custom_call.1} parent=46 // loop_header_branch
                  %170 = sbr.rel (%p168) target = $region54
                $region51: #{tpu_custom_call.1} parent=46 // loop_body
                  %v174 = vld [vmem:[%s172] sm:$0xff]
                  %175 = vst [vmem:[%s173] sm:$0xff] %v174
                  %v176 = vld [vmem:[%s172 + $0x10] sm:$0xff]
                  %177 = vst [vmem:[%s173 + $0x8] sm:$0xff] %v176
                  %v178 = vld [vmem:[%s172 + $0x20] sm:$0xff]
                  %179 = vst [vmem:[%s173 + $0x10] sm:$0xff] %v178
                  %v180 = vld [vmem:[%s172 + $0x30] sm:$0xff]
                  %181 = vst [vmem:[%s173 + $0x18] sm:$0xff] %v180
                $region52: #{tpu_custom_call.1} parent=46 // loop_footer
                  %s171 = sadd.s32 1, %s167
                $region53: #{tpu_custom_call.1} parent=46 // loop_footer_branch
                  %166 = sbr.rel target = $region49
                $region54: #{tpu_custom_call.1} parent=46 // loop_exit
                  _
              $region47: #{tpu_custom_call.1} parent=31 // pred_fallthru
                _
              // Predicated region
              $region55: #{tpu_custom_call.1} parent=31 // pred_check
                _
              $region56: #{tpu_custom_call.1} parent=31 // pred_check_branch
                %183 = sbr.rel target = $region58
              $region57: #{tpu_custom_call.1} parent=31 // pred_region
                _
              $region58: #{tpu_custom_call.1} parent=31 // pred_fallthru
                _
            $region32: #{tpu_custom_call.1} parent=27 // pred_fallthru
              _
            // Predicated region
            $region33: #{tpu_custom_call.1} parent=27 // pred_check
              _
            $region34: #{tpu_custom_call.1} parent=27 // pred_check_branch
              %146 = sbr.rel target = $region36
            $region35: #{tpu_custom_call.1} parent=27 // pred_region
              loop: start=0, step=1, limit=1
              $region37: #{tpu_custom_call.1} parent=35 // loop_pre_header
                _
              $region38: #{tpu_custom_call.1} parent=35 // loop_header
                %s149 = sphi 0, %s153
                %p150 = scmp.ge.s32.totalorder %s149, 1
                %s154 = sphi %s140, %s140
                %s155 = sphi %s138, %s138
              $region39: #{tpu_custom_call.1} parent=35 // loop_header_branch
                %152 = sbr.rel (%p150) target = $region43
              $region40: #{tpu_custom_call.1} parent=35 // loop_body
                %v156 = vld [vmem:[%s154] sm:$0xff]
                %157 = vst [vmem:[%s155] sm:$0xff] %v156
                %v158 = vld [vmem:[%s154 + $0x10] sm:$0xff]
                %159 = vst [vmem:[%s155 + $0x8] sm:$0xff] %v158
                %v160 = vld [vmem:[%s154 + $0x20] sm:$0xff]
                %161 = vst [vmem:[%s155 + $0x10] sm:$0xff] %v160
                %v162 = vld [vmem:[%s154 + $0x30] sm:$0xff]
                %163 = vst [vmem:[%s155 + $0x18] sm:$0xff] %v162
              $region41: #{tpu_custom_call.1} parent=35 // loop_footer
                %s153 = sadd.s32 1, %s149
              $region42: #{tpu_custom_call.1} parent=35 // loop_footer_branch
                %148 = sbr.rel target = $region38
              $region43: #{tpu_custom_call.1} parent=35 // loop_exit
                _
            $region36: #{tpu_custom_call.1} parent=27 // pred_fallthru
              _
          $region28: #{tpu_custom_call.1} parent=23 // pred_fallthru
            _
          %184 = vnop
        $region24: #{tpu_custom_call.1} parent=15 // pred_fallthru
          _
      $region16: #{tpu_custom_call.1} parent=5 // pred_fallthru
        _
      %p185 = scmp.le.s32.totalorder 1, %s14
      %p186 = scmp.lt.s32.totalorder %s14, 3
      %p187 = pnand %p185, %p186
      %p188 = pneg %p187
      // Predicated region
      $region59: #{tpu_custom_call.1} parent=5 // pred_check
        _
      $region60: #{tpu_custom_call.1} parent=5 // pred_check_branch
        %190 = sbr.rel (%p187) target = $region62
      $region61: #{tpu_custom_call.1} parent=5 // pred_region
        %s191 = ssub.s32 %s14, 1
        %s192 = sand.u32 %s27, 1
        %s193 = scalar_lea.sflag [#allocation3], %s192
        %s194 = sand.u32 %s27, 1
        %s195 = smul.addr %s194, 64
        %s196 = scalar_lea.vmem [#allocation2], %s195
        // Predicated region
        $region63: #{tpu_custom_call.1} parent=61 // pred_check
          %p197 = pneg %p40
        $region64: #{tpu_custom_call.1} parent=61 // pred_check_branch
          %199 = sbr.rel (%p197) target = $region66
        $region65: #{tpu_custom_call.1} parent=61 // pred_region
          %200 = dma.done %s193, 1024
        $region66: #{tpu_custom_call.1} parent=61 // pred_fallthru
          _
        %s201 = sand.u32 %s53, 1
        %s202 = sand.u32 %s53, 1
        %s203 = smul.addr %s202, 32
        %s204 = scalar_lea.vmem [#allocation5], %s203
        // Predicated region
        $region67: #{tpu_custom_call.1} parent=61 // pred_check
          %p205 = pneg %p66
        $region68: #{tpu_custom_call.1} parent=61 // pred_check_branch
          %207 = sbr.rel (%p205) target = $region70
        $region69: #{tpu_custom_call.1} parent=61 // pred_region
          _
        $region70: #{tpu_custom_call.1} parent=61 // pred_fallthru
          _
        %s208 = sand.u32 %s27, 1
        %s209 = scalar_lea.sflag [#allocation3], %s208
        %s210 = sand.u32 %s27, 1
        %s211 = smul.addr %s210, 64
        %s212 = scalar_lea.vmem [#allocation2], %s211
        %p213 = pneg %p40
        %p214 = pneg %p37
        %s215 = sand.u32 %s53, 1
        %s216 = sand.u32 %s53, 1
        %s217 = smul.addr %s216, 32
        %s218 = scalar_lea.vmem [#allocation5], %s217
        %p219 = pneg %p66
        %p220 = pneg %p63
        %p221 = pneg %p92
        %p222 = pneg %p89
        %s223 = sand.u32 %s79, 1
        %s224 = scalar_lea.sflag [#allocation4], %s223
        %s225 = sand.u32 %s79, 1
        %s226 = smul.addr %s225, 64
        %s227 = scalar_lea.vmem [#allocation6], %s226
        %v228 = vld [vmem:[%s196] sm:$0xff]
        %v229 = vld [vmem:[%s196 + $0x8] sm:$0xff]
        %v230 = vld [vmem:[%s196 + $0x10] sm:$0xff]
        %v231 = vld [vmem:[%s196 + $0x18] sm:$0xff]
        %v232 = vld [vmem:[%s196 + $0x20] sm:$0xff]
        %v233 = vld [vmem:[%s196 + $0x28] sm:$0xff]
        %v234 = vld [vmem:[%s196 + $0x30] sm:$0xff]
        %v235 = vld [vmem:[%s196 + $0x38] sm:$0xff]
        %v236 = vadd.f32 %v228, %v229
        %237 = vadd.xlane.f32.xlu0 %v236
        %v238 = vpop.xlane.xlu0 %237
        %v239 = vadd.f32 %v230, %v231
        %240 = vadd.xlane.f32.xlu0 %v239
        %v241 = vpop.xlane.xlu0 %240
        %v242 = vadd.f32 %v232, %v233
        %243 = vadd.xlane.f32.xlu0 %v242
        %v244 = vpop.xlane.xlu0 %243
        %v245 = vadd.f32 %v234, %v235
        %246 = vadd.xlane.f32.xlu0 %v245
        %v247 = vpop.xlane.xlu0 %246
        %v248 = vadd.f32 %v238, %v241
        %v249 = vadd.f32 %v248, %v244
        %v250 = vadd.f32 %v249, %v247
        %v251 = vmul.f32 %v250, 0.0009765625
        %v252 = vsub.f32 %v228, %v251
        %v253 = vsub.f32 %v229, %v251
        %v254 = vsub.f32 %v230, %v251
        %v255 = vsub.f32 %v231, %v251
        %v256 = vsub.f32 %v232, %v251
        %v257 = vsub.f32 %v233, %v251
        %v258 = vsub.f32 %v234, %v251
        %v259 = vsub.f32 %v235, %v251
        %v260 = vmul.f32 %v252, %v252
        %v261 = vmul.f32 %v253, %v253
        %v262 = vmul.f32 %v254, %v254
        %v263 = vmul.f32 %v255, %v255
        %v264 = vmul.f32 %v256, %v256
        %v265 = vmul.f32 %v257, %v257
        %v266 = vmul.f32 %v258, %v258
        %v267 = vmul.f32 %v259, %v259
        %v268 = vadd.f32 %v260, %v261
        %269 = vadd.xlane.f32.xlu0 %v268
        %v270 = vpop.xlane.xlu0 %269
        %v271 = vadd.f32 %v262, %v263
        %272 = vadd.xlane.f32.xlu0 %v271
        %v273 = vpop.xlane.xlu0 %272
        %v274 = vadd.f32 %v264, %v265
        %275 = vadd.xlane.f32.xlu0 %v274
        %v276 = vpop.xlane.xlu0 %275
        %v277 = vadd.f32 %v266, %v267
        %278 = vadd.xlane.f32.xlu0 %v277
        %v279 = vpop.xlane.xlu0 %278
        %v280 = vadd.f32 %v270, %v273
        %v281 = vadd.f32 %v280, %v276
        %v282 = vadd.f32 %v281, %v279
        %v283 = vmul.f32 %v282, 0.0009765625
        %v284 = vadd.f32 %v283, 1e-05
        %v285 = vrsqrt.pop %v284
        %v286 = vld [vmem:[%s204] sm:$0xff]
        %v287 = vld [vmem:[%s204 + $0x8] sm:$0xff]
        %v288 = vld [vmem:[%s204 + $0x10] sm:$0xff]
        %v289 = vld [vmem:[%s204 + $0x18] sm:$0xff]
        %v290 = vmul.f32 %v286, %v285
        %v291 = vmul.f32 %v287, %v285
        %v292 = vmul.f32 %v288, %v285
        %v293 = vmul.f32 %v289, %v285
        %295 = vset.pattern.permute.xlu0 0
        %296 = vperm.xlu0 %295, %v290
        %v297 = vpop.permute.xlu0 %296
        %300 = vset.pattern.permute.xlu0 0
        %301 = vperm.xlu0 %300, %v291
        %v302 = vpop.permute.xlu0 %301
        %305 = vset.pattern.permute.xlu0 0
        %306 = vperm.xlu0 %305, %v292
        %v307 = vpop.permute.xlu0 %306
        %310 = vset.pattern.permute.xlu0 0
        %311 = vperm.xlu0 %310, %v293
        %v312 = vpop.permute.xlu0 %311
        %v314 = vmul.f32 %v252, %v297
        %v315 = vmul.f32 %v253, %v297
        %v316 = vmul.f32 %v254, %v302
        %v317 = vmul.f32 %v255, %v302
        %v318 = vmul.f32 %v256, %v307
        %v319 = vmul.f32 %v257, %v307
        %v320 = vmul.f32 %v258, %v312
        %v321 = vmul.f32 %v259, %v312
        %323 = vset.pattern.permute.xlu0 1
        %324 = vperm.xlu0 %323, %v286
        %v325 = vpop.permute.xlu0 %324
        %328 = vset.pattern.permute.xlu0 1
        %329 = vperm.xlu0 %328, %v287
        %v330 = vpop.permute.xlu0 %329
        %333 = vset.pattern.permute.xlu0 1
        %334 = vperm.xlu0 %333, %v288
        %v335 = vpop.permute.xlu0 %334
        %338 = vset.pattern.permute.xlu0 1
        %339 = vperm.xlu0 %338, %v289
        %v340 = vpop.permute.xlu0 %339
        %v342 = vadd.f32 %v314, %v325
        %v343 = vadd.f32 %v315, %v325
        %v344 = vadd.f32 %v316, %v330
        %v345 = vadd.f32 %v317, %v330
        %v346 = vadd.f32 %v318, %v335
        %v347 = vadd.f32 %v319, %v335
        %v348 = vadd.f32 %v320, %v340
        %v349 = vadd.f32 %v321, %v340
        %350 = vst [vmem:[%s227] sm:$0xff] %v342
        %351 = vst [vmem:[%s227 + $0x8] sm:$0xff] %v343
        %352 = vst [vmem:[%s227 + $0x10] sm:$0xff] %v344
        %353 = vst [vmem:[%s227 + $0x18] sm:$0xff] %v345
        %354 = vst [vmem:[%s227 + $0x20] sm:$0xff] %v346
        %355 = vst [vmem:[%s227 + $0x28] sm:$0xff] %v347
        %356 = vst [vmem:[%s227 + $0x30] sm:$0xff] %v348
        %357 = vst [vmem:[%s227 + $0x38] sm:$0xff] %v349
        %s358 = sand.u32 %s79, 1
        %s359 = scalar_lea.sflag [#allocation4], %s358
        %s360 = sand.u32 %s79, 1
        %s361 = smul.addr %s360, 64
        %s362 = scalar_lea.vmem [#allocation6], %s361
        // Predicated region
        $region71: #{tpu_custom_call.1} parent=61 // pred_check
          %p363 = pneg %p89
        $region72: #{tpu_custom_call.1} parent=61 // pred_check_branch
          %365 = sbr.rel (%p363) target = $region74
        $region73: #{tpu_custom_call.1} parent=61 // pred_region
          %s367 = ssub.s32 1024, 1024
          %368 = vsyncadd %s359, %s367
          %s369 = smul.addr %s19, 2
          %s370 = smul.addr %s369, 128
          %s371 = scalar_lea.hbm %s2, %s370
          %s372 = sshll.u32 %s362, 4
          %s373 = int_to_ptr.vmem [resolvable:$true] %s372
          %378 = dma.vmem_to_hbm [thread:$0]  %s373, 1024, %s371, %s359, 256, 512, 16
        $region74: #{tpu_custom_call.1} parent=61 // pred_fallthru
          _
      $region62: #{tpu_custom_call.1} parent=5 // pred_fallthru
        _
      %p379 = scmp.le.s32.totalorder 2, %s14
      // Predicated region
      $region75: #{tpu_custom_call.1} parent=5 // pred_check
        %p380 = pneg %p379
      $region76: #{tpu_custom_call.1} parent=5 // pred_check_branch
        %382 = sbr.rel (%p380) target = $region78
      $region77: #{tpu_custom_call.1} parent=5 // pred_region
        %s383 = ssub.s32 %s14, 2
        // Predicated region
        $region79: #{tpu_custom_call.1} parent=77 // pred_check
          %p384 = pneg %p95
        $region80: #{tpu_custom_call.1} parent=77 // pred_check_branch
          %386 = sbr.rel (%p384) target = $region82
        $region81: #{tpu_custom_call.1} parent=77 // pred_region
          %s387 = sand.u32 %s80, 1
          %s388 = scalar_lea.sflag [#allocation4], %s387
          %s389 = sand.u32 %s80, 1
          %s390 = smul.addr %s389, 64
          %s391 = scalar_lea.vmem [#allocation6], %s390
          %392 = dma.done %s388, 1024
        $region82: #{tpu_custom_call.1} parent=77 // pred_fallthru
          _
      $region78: #{tpu_custom_call.1} parent=5 // pred_fallthru
        _
    $region6: #{tpu_custom_call.1} parent=1 // loop_footer
      %s18 = sadd.s32 1, %s14
    $region7: #{tpu_custom_call.1} parent=1 // loop_footer_branch
      %13 = sbr.rel target = $region3
    $region8: #{tpu_custom_call.1} parent=1 // loop_exit
      _
    %393 = vsyncpa [#allocation3], 1
    %s394 = scalar_lea.sflag [#allocation3], 1
    %395 = vsyncpa %s394, 1
    %396 = vsyncpa [#allocation4], 1
    %s397 = scalar_lea.sflag [#allocation4], 1
    %398 = vsyncpa %s397, 1

</llo_original>
